<compile_context>
chip_gen: v6e
topology: v6e:2x2x1
jax: 0.10.0
libtpu: 0.0.40
codegen_flags: <defaults>
</compile_context>

<pallas_src>
import functools

import jax
import jax.numpy as jnp
import numpy as np
from jax import lax
from jax.experimental import pallas as pl
from jax.experimental.pallas import tpu as pltpu


def _round_up(x, m):
    return ((x + m - 1) // m) * m


def _pick_tile(n):
    """Pick an (8,128)-friendly tile for the n x n pairwise problem."""
    if n <= 128:
        return _round_up(max(n, 8), 8)            # whole problem in one small tile
    best_pad, best_tile = None, None
    for t in (256, 128):                          # 256^2 f32 temporaries ~ 256 KiB:
        pad = _round_up(n, t)                     # comfortably inside v7x scoped VMEM
        if (best_pad is None or pad < best_pad
                or (pad == best_pad and t > best_tile)):
            best_pad, best_tile = pad, t
    return best_tile


def _mmd_tile_kernel(neg_inv_bw_ref, sqi_ref, sqj_ref, xi_ref, xj_ref, out_ref,
                     *, kernel_mul, kernel_num, batch, n_real, gram_in_bf16):
    """One (tile x tile) block of the signed Gaussian-kernel sum.

    Grid (i, j) runs over row/column tiles of the padded (Np, Dp) total matrix.
    Axis i is 'parallel' (megacore), axis j is 'arbitrary' (reduction); the
    per-row partial accumulator out_ref (tile, 1) stays resident across j.
    """
    i = pl.program_id(0)
    j = pl.program_id(1)
    tile = out_ref.shape[0]

    @pl.when(j == 0)
    def _():
        out_ref[...] = jnp.zeros_like(out_ref)

    xi = xi_ref[...]                               # (tile, Dp)  rows of tile i
    xj = xj_ref[...]                               # (tile, Dp)  rows of tile j

    # <x_i, x_j> block on the MXU (contract the feature axis of both operands).
    if gram_in_bf16:
        # bf16-native MXU path (v6e/v7x): higher MXU throughput, small accuracy loss.
        gram = lax.dot_general(xi.astype(jnp.bfloat16), xj.astype(jnp.bfloat16),
                               (((1,), (1,)), ((), ())),
                               preferred_element_type=jnp.float32)
    else:
        gram = lax.dot_general(xi, xj, (((1,), (1,)), ((), ())),
                               preferred_element_type=jnp.float32)   # (tile, tile)

    # ||xi - xj||^2 from precomputed row norms (no N x N 'ones' matmuls).
    # Clamp: the Gram form can go slightly negative from f32 cancellation.
    l2 = jnp.maximum(sqi_ref[...] + sqj_ref[...] - 2.0 * gram, 0.0)  # (tile, tile)

    # Multi-bandwidth Gaussian kernel sum.  neg_inv_bw[t] = -1 / (bw * mul^t).
    if kernel_mul == 2.0:
        # One EUP exp (largest bandwidth); remaining terms by VPU squaring.
        e = jnp.exp(l2 * neg_inv_bw_ref[kernel_num - 1])
        ksum = e
        for _ in range(kernel_num - 1):
            e = e * e
            ksum = ksum + e
    else:
        # Generic bandwidth ratio: hoisted scalar multipliers, one exp per term.
        ksum = jnp.exp(l2 * neg_inv_bw_ref[0])
        for t in range(1, kernel_num):
            ksum = ksum + jnp.exp(l2 * neg_inv_bw_ref[t])

    # Signed reduction replacing the XX/YY/XY/YX slices:
    #   +1 for source rows/cols, -1 for target, 0 for zero-padded rows/cols.
    row_ids = i * tile + lax.broadcasted_iota(jnp.int32, (tile, 1), 0)
    col_ids = j * tile + lax.broadcasted_iota(jnp.int32, (1, tile), 1)
    s_row = jnp.where(row_ids < batch, 1.0, jnp.where(row_ids < n_real, -1.0, 0.0))
    s_col = jnp.where(col_ids < batch, 1.0, jnp.where(col_ids < n_real, -1.0, 0.0))

    rowsum = jnp.sum(ksum * s_col, axis=-1, keepdims=True)           # (tile, 1)
    out_ref[...] += s_row * rowsum


def mmd_loss(source, target, kernel_mul=2.0, kernel_num=5, fix_sigma=None,
             gram_in_bf16=False):
    """Pallas TPU implementation of MMD_loss.forward(source, target)."""
    source = jnp.asarray(source, jnp.float32)
    target = jnp.asarray(target, jnp.float32)
    n_s, d = source.shape
    n_t, d2 = target.shape
    assert d == d2, "source and target must have the same feature dimension"
    n = n_s + n_t
    b = n // 2                                     # matches torch: (n_s + n_t) // 2

    # NOTE: the concat costs one extra HBM copy of (N, D); splitting the two
    # operands per tile is not worth the index_map complexity at MMD sizes.
    total = jnp.concatenate([source, target], axis=0)                  # (N, D)

    # O(N*D) statistics (plain-JAX glue): the row squared-norms feed the
    # in-kernel distance reconstruction, and the bandwidth is computed
    # analytically via  sum_ij ||xi-xj||^2 = 2*N*sum_i||xi||^2 - 2*||sum_i xi||^2,
    # so the N^2 phase runs in a single tiled pass (no L2-matrix writeback).
    sq = jnp.sum(total * total, axis=-1)                               # (N,)
    if fix_sigma is not None:
        bandwidth = jnp.float32(fix_sigma)
    else:
        colsum = jnp.sum(total, axis=0)                                # (D,)
        l2_sum = 2.0 * (n * jnp.sum(sq) - jnp.dot(colsum, colsum))
        # NOTE: degenerate inputs (source == target) give bandwidth == 0 and a
        # NaN loss, exactly like the torch reference.
        bandwidth = l2_sum / float(n * n - n)
    bandwidth = bandwidth / (kernel_mul ** (kernel_num // 2))
    # Per-bandwidth scalar multipliers: the per-element divide becomes a
    # scalar * vreg multiply inside the kernel.
    neg_inv_bw = (-1.0 / (bandwidth * kernel_mul ** jnp.arange(kernel_num))
                  ).astype(jnp.float32)                                # (kernel_num,)

    tile = _pick_tile(n)
    n_pad = _round_up(n, tile)
    d_pad = _round_up(d, 128)      # lane-dense features; zero padding is exact
    total_p = jnp.pad(total, ((0, n_pad - n), (0, d_pad - d)))
    sq_p = jnp.pad(sq, (0, n_pad - n))
    sq_col = sq_p[:, None]         # (Np, 1): row norms along sublanes (for i)
    sq_row = sq_p[None, :]         # (1, Np): row norms along lanes    (for j)

    grid = (n_pad // tile, n_pad // tile)
    kernel = functools.partial(
        _mmd_tile_kernel,
        kernel_mul=float(kernel_mul), kernel_num=int(kernel_num),
        batch=int(b), n_real=int(n), gram_in_bf16=bool(gram_in_bf16))

    row_partials = pl.pallas_call(
        kernel,
        out_shape=jax.ShapeDtypeStruct((n_pad, 1), jnp.float32),
        grid=grid,
        in_specs=[
            pl.BlockSpec(memory_space=pltpu.MemorySpace.SMEM),          # -1/bandwidths
            pl.BlockSpec((tile, 1), lambda i, j: (i, 0)),               # ||x_i||^2
            pl.BlockSpec((1, tile), lambda i, j: (0, j)),               # ||x_j||^2
            pl.BlockSpec((tile, d_pad), lambda i, j: (i, 0)),           # row tile
            pl.BlockSpec((tile, d_pad), lambda i, j: (j, 0)),           # column tile
        ],
        out_specs=pl.BlockSpec((tile, 1), lambda i, j: (i, 0)),         # per-row partials
        compiler_params=pltpu.CompilerParams(
            dimension_semantics=("parallel", "arbitrary")),
    )(neg_inv_bw, sq_col, sq_row, total_p, total_p)

    # mean(XX + YY - XY - YX) == (sign-weighted sum over the kernel matrix) / b^2.
    return jnp.sum(row_partials) / float(b * b)


def mmd_loss_reference(source, target, kernel_mul=2.0, kernel_num=5, fix_sigma=None):
    """Plain-JAX reference with the exact torch broadcast semantics."""
    total = jnp.concatenate([jnp.asarray(source, jnp.float32),
                             jnp.asarray(target, jnp.float32)], axis=0)
    n = total.shape[0]
    b = n // 2
    diff = total[None, :, :] - total[:, None, :]
    l2 = jnp.sum(diff * diff, axis=2)
    if fix_sigma is not None:
        bandwidth = fix_sigma
    else:
        bandwidth = jnp.sum(l2) / (n * n - n)
    bandwidth = bandwidth / (kernel_mul ** (kernel_num // 2))
    kernels = sum(jnp.exp(-l2 / (bandwidth * kernel_mul ** i)) for i in range(kernel_num))
    return jnp.mean(kernels[:b, :b] + kernels[b:, b:] - kernels[:b, b:] - kernels[b:, :b])


if __name__ == "__main__":
    key = jax.random.PRNGKey(0)
    k1, k2, k3, k4 = jax.random.split(key, 4)

    # Small case: per-domain batch 8, feature dim 32 (single tile, lane padding).
    B, D = 8, 32
    source = jax.random.normal(k1, (B, D), dtype=jnp.float32)
    target = jax.random.normal(k2, (B, D), dtype=jnp.float32) + 0.5

    loss = jax.block_until_ready(mmd_loss(source, target))
    ref = jax.block_until_ready(mmd_loss_reference(source, target))
    np.testing.assert_allclose(np.asarray(loss), np.asarray(ref), rtol=1e-4, atol=1e-4)

    # Non-default kernel_mul exercises the generic exp path.
    loss3 = jax.block_until_ready(mmd_loss(source, target, kernel_mul=3.0))
    ref3 = jax.block_until_ready(mmd_loss_reference(source, target, kernel_mul=3.0))
    np.testing.assert_allclose(np.asarray(loss3), np.asarray(ref3), rtol=1e-4, atol=1e-4)

    # Larger, non-aligned case: exercises row padding and a multi-tile (3x3) grid.
    B2, D2 = 130, 48
    source2 = jax.random.normal(k3, (B2, D2), dtype=jnp.float32)
    target2 = jax.random.normal(k4, (B2, D2), dtype=jnp.float32) + 0.25
    loss2 = jax.block_until_ready(mmd_loss(source2, target2))
    ref2 = jax.block_until_ready(mmd_loss_reference(source2, target2))
    np.testing.assert_allclose(np.asarray(loss2), np.asarray(ref2), rtol=1e-4, atol=1e-4)

    # bf16-Gram MXU fast path (v6e/v7x knob): looser tolerance by construction.
    loss_bf16 = jax.block_until_ready(mmd_loss(source, target, gram_in_bf16=True))
    np.testing.assert_allclose(np.asarray(loss_bf16), np.asarray(ref), rtol=5e-2, atol=5e-2)

    print("KERNEL_OK")
</pallas_src>

<mosaic_0001>
module attributes {stable_mosaic.version = 11 : i64} {
  func.func @_mmd_tile_kernel(%arg0: i32, %arg1: i32, %arg2: memref<5xf32, #tpu.memory_space<smem>>, %arg3: memref<16x1xf32, #tpu.memory_space<vmem>>, %arg4: memref<1x16xf32, #tpu.memory_space<vmem>>, %arg5: memref<16x128xf32, #tpu.memory_space<vmem>>, %arg6: memref<16x128xf32, #tpu.memory_space<vmem>>, %arg7: memref<16x1xf32, #tpu.memory_space<vmem>>) attributes {dimension_semantics = [#tpu.dimension_semantics<parallel>, #tpu.dimension_semantics<arbitrary>], iteration_bounds = array<i64: 1, 1>, scalar_prefetch = 0 : i64, scratch_operands = 0 : i64, tpu.core_type = #tpu.core_type<tc>, window_params = [{transform_indices = @transform_0, window_bounds = array<i64: 5>}, {transform_indices = @transform_1, window_bounds = array<i64: 16, 1>}, {transform_indices = @transform_2, window_bounds = array<i64: 1, 16>}, {transform_indices = @transform_3, window_bounds = array<i64: 16, 128>}, {transform_indices = @transform_4, window_bounds = array<i64: 16, 128>}, {transform_indices = @transform_5, window_bounds = array<i64: 16, 1>}]} {
    %c0_i32 = arith.constant 0 : i32
    %0 = arith.cmpi eq, %arg1, %c0_i32 : i32
    %1 = arith.extui %0 : i1 to i32
    %c0_i32_0 = arith.constant 0 : i32
    %2 = arith.cmpi ne, %1, %c0_i32_0 : i32
    scf.if %2 {
      %cst_25 = arith.constant 0.000000e+00 : f32
      %62 = vector.broadcast %cst_25 : f32 to vector<16x1xf32>
      %c0_26 = arith.constant 0 : index
      %c0_27 = arith.constant 0 : index
      %63 = vector.load %arg7[%c0_26, %c0_27] : memref<16x1xf32, #tpu.memory_space<vmem>>, vector<16x1xf32>
      tpu.vector_store %arg7[%c0_26, %c0_27], %62 {strides = array<i32>} : memref<16x1xf32, #tpu.memory_space<vmem>>, vector<16x1xf32>,
    } else {
    }
    %c0 = arith.constant 0 : index
    %c0_1 = arith.constant 0 : index
    %3 = vector.load %arg5[%c0, %c0_1] : memref<16x128xf32, #tpu.memory_space<vmem>>, vector<16x128xf32>
    %c0_2 = arith.constant 0 : index
    %c0_3 = arith.constant 0 : index
    %4 = vector.load %arg6[%c0_2, %c0_3] : memref<16x128xf32, #tpu.memory_space<vmem>>, vector<16x128xf32>
    %cst = arith.constant dense<0.000000e+00> : vector<16x16xf32>
    %5 = tpu.matmul %3, %4, %cst {dimension_numbers = #tpu.dot_dimension_numbers<[1], [1], [0], [0], [0, 0, 1, 0], [], []>} : vector<16x128xf32>, vector<16x128xf32>, vector<16x16xf32> -> vector<16x16xf32>
    %c0_4 = arith.constant 0 : index
    %c0_5 = arith.constant 0 : index
    %6 = vector.load %arg3[%c0_4, %c0_5] : memref<16x1xf32, #tpu.memory_space<vmem>>, vector<16x1xf32>
    %c0_6 = arith.constant 0 : index
    %c0_7 = arith.constant 0 : index
    %7 = vector.load %arg4[%c0_6, %c0_7] : memref<1x16xf32, #tpu.memory_space<vmem>>, vector<1x16xf32>
    %8 = vector.broadcast %6 : vector<16x1xf32> to vector<16x16xf32>
    %9 = vector.broadcast %7 : vector<1x16xf32> to vector<16x16xf32>
    %10 = arith.addf %8, %9 : vector<16x16xf32>
    %cst_8 = arith.constant 2.000000e+00 : f32
    %11 = vector.broadcast %cst_8 : f32 to vector<16x16xf32>
    %12 = arith.mulf %11, %5 : vector<16x16xf32>
    %13 = arith.subf %10, %12 : vector<16x16xf32>
    %cst_9 = arith.constant 0.000000e+00 : f32
    %14 = vector.broadcast %cst_9 : f32 to vector<16x16xf32>
    %15 = arith.maximumf %13, %14 : vector<16x16xf32>
    %c4 = arith.constant 4 : index
    %16 = memref.load %arg2[%c4] : memref<5xf32, #tpu.memory_space<smem>>
    %17 = vector.broadcast %16 : f32 to vector<16x16xf32>
    %18 = arith.mulf %15, %17 : vector<16x16xf32>
    %19 = math.exp %18 : vector<16x16xf32>
    %20 = arith.mulf %19, %19 : vector<16x16xf32>
    %21 = arith.addf %19, %20 : vector<16x16xf32>
    %22 = arith.mulf %20, %20 : vector<16x16xf32>
    %23 = arith.addf %21, %22 : vector<16x16xf32>
    %24 = arith.mulf %22, %22 : vector<16x16xf32>
    %25 = arith.addf %23, %24 : vector<16x16xf32>
    %26 = arith.mulf %24, %24 : vector<16x16xf32>
    %27 = arith.addf %25, %26 : vector<16x16xf32>
    %c16_i32 = arith.constant 16 : i32
    %28 = arith.muli %arg0, %c16_i32 : i32
    %29 = tpu.iota {dimensions = array<i32: 0>} : vector<16x1xi32>
    %30 = vector.broadcast %28 : i32 to vector<16x1xi32>
    %31 = arith.addi %30, %29 : vector<16x1xi32>
    %c16_i32_10 = arith.constant 16 : i32
    %32 = arith.muli %arg1, %c16_i32_10 : i32
    %33 = tpu.iota {dimensions = array<i32: 1>} : vector<1x16xi32>
    %34 = vector.broadcast %32 : i32 to vector<1x16xi32>
    %35 = arith.addi %34, %33 : vector<1x16xi32>
    %c8_i32 = arith.constant 8 : i32
    %36 = vector.broadcast %c8_i32 : i32 to vector<16x1xi32>
    %37 = arith.cmpi slt, %31, %36 : vector<16x1xi32>
    %c16_i32_11 = arith.constant 16 : i32
    %38 = vector.broadcast %c16_i32_11 : i32 to vector<16x1xi32>
    %39 = arith.cmpi slt, %31, %38 : vector<16x1xi32>
    %cst_12 = arith.constant -1.000000e+00 : f32
    %cst_13 = arith.constant 0.000000e+00 : f32
    %40 = vector.broadcast %cst_12 : f32 to vector<16x1xf32>
    %41 = vector.broadcast %cst_13 : f32 to vector<16x1xf32>
    %42 = arith.select %39, %40, %41 : vector<16x1xi1>, vector<16x1xf32>
    %cst_14 = arith.constant 1.000000e+00 : f32
    %43 = vector.broadcast %cst_14 : f32 to vector<16x1xf32>
    %44 = arith.select %37, %43, %42 : vector<16x1xi1>, vector<16x1xf32>
    %c8_i32_15 = arith.constant 8 : i32
    %45 = vector.broadcast %c8_i32_15 : i32 to vector<1x16xi32>
    %46 = arith.cmpi slt, %35, %45 : vector<1x16xi32>
    %c16_i32_16 = arith.constant 16 : i32
    %47 = vector.broadcast %c16_i32_16 : i32 to vector<1x16xi32>
    %48 = arith.cmpi slt, %35, %47 : vector<1x16xi32>
    %cst_17 = arith.constant -1.000000e+00 : f32
    %cst_18 = arith.constant 0.000000e+00 : f32
    %49 = vector.broadcast %cst_17 : f32 to vector<1x16xf32>
    %50 = vector.broadcast %cst_18 : f32 to vector<1x16xf32>
    %51 = arith.select %48, %49, %50 : vector<1x16xi1>, vector<1x16xf32>
    %cst_19 = arith.constant 1.000000e+00 : f32
    %52 = vector.broadcast %cst_19 : f32 to vector<1x16xf32>
    %53 = arith.select %46, %52, %51 : vector<1x16xi1>, vector<1x16xf32>
    %54 = vector.broadcast %53 : vector<1x16xf32> to vector<16x16xf32>
    %55 = arith.mulf %27, %54 : vector<16x16xf32>
    %cst_20 = arith.constant dense<0.000000e+00> : vector<16xf32>
    %56 = vector.multi_reduction <add>, %55, %cst_20 [1] : vector<16x16xf32> to vector<16xf32>
    %57 = vector.shape_cast %56 : vector<16xf32> to vector<16x1xf32>
    %c0_21 = arith.constant 0 : index
    %c0_22 = arith.constant 0 : index
    %58 = vector.load %arg7[%c0_21, %c0_22] : memref<16x1xf32, #tpu.memory_space<vmem>>, vector<16x1xf32>
    %59 = arith.mulf %44, %57 : vector<16x1xf32>
    %60 = arith.addf %58, %59 : vector<16x1xf32>
    %c0_23 = arith.constant 0 : index
    %c0_24 = arith.constant 0 : index
    %61 = vector.load %arg7[%c0_23, %c0_24] : memref<16x1xf32, #tpu.memory_space<vmem>>, vector<16x1xf32>
    tpu.vector_store %arg7[%c0_23, %c0_24], %60 {strides = array<i32>} : memref<16x1xf32, #tpu.memory_space<vmem>>, vector<16x1xf32>,
    return
  }
  func.func @transform_0(%arg0: i32, %arg1: i32) -> i32 {
    %c0_i32 = arith.constant 0 : i32
    %c0_i32_0 = arith.constant 0 : i32
    return %c0_i32 : i32
  }
  func.func @transform_1(%arg0: i32, %arg1: i32) -> (i32, i32) {
    %c0_i32 = arith.constant 0 : i32
    %c0_i32_0 = arith.constant 0 : i32
    return %arg0, %c0_i32 : i32, i32
  }
  func.func @transform_2(%arg0: i32, %arg1: i32) -> (i32, i32) {
    %c0_i32 = arith.constant 0 : i32
    %c0_i32_0 = arith.constant 0 : i32
    return %c0_i32, %arg1 : i32, i32
  }
  func.func @transform_3(%arg0: i32, %arg1: i32) -> (i32, i32) {
    %c0_i32 = arith.constant 0 : i32
    %c0_i32_0 = arith.constant 0 : i32
    return %arg0, %c0_i32 : i32, i32
  }
  func.func @transform_4(%arg0: i32, %arg1: i32) -> (i32, i32) {
    %c0_i32 = arith.constant 0 : i32
    %c0_i32_0 = arith.constant 0 : i32
    return %arg1, %c0_i32 : i32, i32
  }
  func.func @transform_5(%arg0: i32, %arg1: i32) -> (i32, i32) {
    %c0_i32 = arith.constant 0 : i32
    %c0_i32_0 = arith.constant 0 : i32
    return %arg0, %c0_i32 : i32, i32
  }
}

</mosaic_0001>

<llo_original>
// kernel: tpu_custom_call.1
$region0: #{tpu_custom_call.1}
  #allocation0 [shape = 'u32[]', space=smem, size = 0x4, offset = 0x4, fixed_abs, tag = 'smem constant byte address 0x4 - core index']
  #allocation1 [shape = 'u32[144,128]{1,0:T(1,128)}', space=vmem, size = 0x12000, scoped, tag = 'internal scratch']
  %s0 = inlined_call_operand.vmem [shape: f32[5], index: 0, kind: input, shape index: {}]
  %s1 = inlined_call_operand.vmem [shape: f32[16,1], index: 1, kind: input, shape index: {}]
  %s2 = inlined_call_operand.vmem [shape: f32[1,16], index: 2, kind: input, shape index: {}]
  %s3 = inlined_call_operand.vmem [shape: f32[16,128], index: 3, kind: input, shape index: {}]
  %s4 = inlined_call_operand.hbm [shape: f32[16,128], index: 4, kind: input, shape index: {}]
  %s5 = inlined_call_operand.vmem [shape: f32[16,1], index: 5, kind: output, shape index: {}]
  %s6 = sld [smem:[#allocation0]]
  $region42: #{tpu_custom_call.1} parent=0
    _
  %s8 = ssub.s32 1, %s6
  %s9 = scalar_select 0, %s8, %s6
  $region1: #{tpu_custom_call.1} parent=0
    #allocation2 [shape = 'u8[512]{0}', space=smem, size = 0x200, scoped, tag = 'input window, operand 0, single buffered']
    #allocation3 [shape = 's32[1]{0}', space=sflag, size = 0x4, scoped, tag = 'scoped memory for tpu_custom_call.1']
    #allocation4 [shape = 's32[1]{0}', space=sflag, size = 0x4, scoped, tag = 'scoped memory for tpu_custom_call.1']
    #allocation5 [shape = 'u8[8192]{0}', space=vmem, size = 0x2000, scoped, tag = 'input window, operand 4, single buffered']
    %10 = vsyncpa [#allocation4], 0
    %11 = vsyncpa [#allocation3], 0
    // Predicated region
    $region2: #{tpu_custom_call.1} parent=1 // pred_check
      _
    $region3: #{tpu_custom_call.1} parent=1 // pred_check_branch
      %13 = sbr.rel (0) target = $region5
    $region4: #{tpu_custom_call.1} parent=1 // pred_region
      %s15 = ssub.s32 16, 16
      %16 = vsyncadd [#allocation4], %s15
      %s18 = sshll.u32 %s0, 4
      %s19 = int_to_ptr.vmem [resolvable:$true] %s18
      %21 = dma.vmem_to_smem %s19, 16, [#allocation2], [#allocation4]
    $region5: #{tpu_custom_call.1} parent=1 // pred_fallthru
      _
    // Predicated region
    $region6: #{tpu_custom_call.1} parent=1 // pred_check
      _
    $region7: #{tpu_custom_call.1} parent=1 // pred_check_branch
      %23 = sbr.rel (0) target = $region9
    $region8: #{tpu_custom_call.1} parent=1 // pred_region
      _
    $region9: #{tpu_custom_call.1} parent=1 // pred_fallthru
      _
    // Predicated region
    $region10: #{tpu_custom_call.1} parent=1 // pred_check
      _
    $region11: #{tpu_custom_call.1} parent=1 // pred_check_branch
      %25 = sbr.rel (0) target = $region13
    $region12: #{tpu_custom_call.1} parent=1 // pred_region
      _
    $region13: #{tpu_custom_call.1} parent=1 // pred_fallthru
      _
    // Predicated region
    $region14: #{tpu_custom_call.1} parent=1 // pred_check
      _
    $region15: #{tpu_custom_call.1} parent=1 // pred_check_branch
      %27 = sbr.rel (0) target = $region17
    $region16: #{tpu_custom_call.1} parent=1 // pred_region
      _
    $region17: #{tpu_custom_call.1} parent=1 // pred_fallthru
      _
    // Predicated region
    $region18: #{tpu_custom_call.1} parent=1 // pred_check
      _
    $region19: #{tpu_custom_call.1} parent=1 // pred_check_branch
      %29 = sbr.rel (0) target = $region21
    $region20: #{tpu_custom_call.1} parent=1 // pred_region
      %s31 = ssub.s32 256, 256
      %32 = vsyncadd [#allocation3], %s31
      %s33 = sshll.u32 [#allocation5], 4
      %s34 = int_to_ptr.vmem [resolvable:$true] %s33
      %39 = dma.hbm_to_vmem [thread:$0]  %s4, 256, %s34, [#allocation3], 128, 128, 8
    $region21: #{tpu_custom_call.1} parent=1 // pred_fallthru
      _
    // Predicated region
    $region22: #{tpu_custom_call.1} parent=1 // pred_check
      _
    $region23: #{tpu_custom_call.1} parent=1 // pred_check_branch
      %41 = sbr.rel (0) target = $region25
    $region24: #{tpu_custom_call.1} parent=1 // pred_region
      %42 = dma.done [#allocation4], 16
    $region25: #{tpu_custom_call.1} parent=1 // pred_fallthru
      _
    // Predicated region
    $region26: #{tpu_custom_call.1} parent=1 // pred_check
      _
    $region27: #{tpu_custom_call.1} parent=1 // pred_check_branch
      %44 = sbr.rel (0) target = $region29
    $region28: #{tpu_custom_call.1} parent=1 // pred_region
      %45 = dma.done [#allocation3], 256
    $region29: #{tpu_custom_call.1} parent=1 // pred_fallthru
      _
    %46 = sfence
    %p47 = scmp.eq.s32.totalorder 0, 0
    // Predicated region
    $region30: #{tpu_custom_call.1} parent=1 // pred_check
      %p48 = pneg %p47
    $region31: #{tpu_custom_call.1} parent=1 // pred_check_branch
      %50 = sbr.rel (%p48) target = $region33
    $region32: #{tpu_custom_call.1} parent=1 // pred_region
      %vm51 = vcmask 7168
      %52 = vst.msk [vmem:[%s5] sm:$0xff] %vm51, 0.0
      %53 = vst.msk [vmem:[%s5 + $0x8] sm:$0xff] %vm51, 0.0
    $region33: #{tpu_custom_call.1} parent=1 // pred_fallthru
      _
    %v54 = vld [vmem:[%s3] sm:$0xff]
    %v55 = vld [vmem:[%s3 + $0x8] sm:$0xff]
    %v56 = vld [vmem:[#allocation5] sm:$0xff]
    %v57 = vld [vmem:[#allocation5 + $0x8] sm:$0xff]
    %58 = vmatprep.subr.mxu0 0.0
    %59 = vmatpush1.xpose.msra.mxu0 0.0
    %60 = vmatprep.subr.mxu0 0.0
    %61 = vmatpush1.xpose.msra.mxu0 0.0
    %62 = vmatprep.subr.mxu0 0.0
    %63 = vmatpush1.xpose.msra.mxu0 0.0
    %64 = vmatprep.subr.mxu0 0.0
    %65 = vmatpush1.xpose.msra.mxu0 0.0
    %66 = vmatprep.subr.mxu0 0.0
    %67 = vmatpush1.xpose.msra.mxu0 0.0
    %68 = vmatprep.subr.mxu0 0.0
    %69 = vmatpush1.xpose.msra.mxu0 0.0
    %70 = vmatprep.subr.mxu0 0.0
    %71 = vmatpush1.xpose.msra.mxu0 0.0
    %72 = vmatprep.subr.mxu0 0.0
    %73 = vmatpush1.xpose.msra.mxu0 0.0
    %74 = vmatprep.subr.mxu0 0.0
    %75 = vmatpush1.xpose.msra.mxu0 0.0
    %76 = vmatprep.subr.mxu0 0.0
    %77 = vmatpush1.xpose.msra.mxu0 0.0
    %78 = vmatprep.subr.mxu0 0.0
    %79 = vmatpush1.xpose.msra.mxu0 0.0
    %80 = vmatprep.subr.mxu0 0.0
    %81 = vmatpush1.xpose.msra.mxu0 0.0
    %82 = vmatprep.subr.mxu0 0.0
    %83 = vmatpush1.xpose.msra.mxu0 0.0
    %84 = vmatprep.subr.mxu0 0.0
    %85 = vmatpush1.xpose.msra.mxu0 0.0
    %86 = vmatprep.subr.mxu0 0.0
    %87 = vmatpush1.xpose.msra.mxu0 %v57
    %88 = vmatprep.subr.mxu0 0.0
    %89 = vmatpush1.xpose.msra.mxu0 %v56
    %90 = vmatprep.subr.mxu0 0.0
    %91 = vmatpush2.xpose.msra.mxu0 0.0
    %92 = vmatprep.subr.mxu0 0.0
    %93 = vmatpush2.xpose.msra.mxu0 0.0
    %94 = vmatprep.subr.mxu0 0.0
    %95 = vmatpush2.xpose.msra.mxu0 0.0
    %96 = vmatprep.subr.mxu0 0.0
    %97 = vmatpush2.xpose.msra.mxu0 0.0
    %98 = vmatprep.subr.mxu0 0.0
    %99 = vmatpush2.xpose.msra.mxu0 0.0
    %100 = vmatprep.subr.mxu0 0.0
    %101 = vmatpush2.xpose.msra.mxu0 0.0
    %102 = vmatprep.subr.mxu0 0.0
    %103 = vmatpush2.xpose.msra.mxu0 0.0
    %104 = vmatprep.subr.mxu0 0.0
    %105 = vmatpush2.xpose.msra.mxu0 0.0
    %106 = vmatprep.subr.mxu0 0.0
    %107 = vmatpush2.xpose.msra.mxu0 0.0
    %108 = vmatprep.subr.mxu0 0.0
    %109 = vmatpush2.xpose.msra.mxu0 0.0
    %110 = vmatprep.subr.mxu0 0.0
    %111 = vmatpush2.xpose.msra.mxu0 0.0
    %112 = vmatprep.subr.mxu0 0.0
    %113 = vmatpush2.xpose.msra.mxu0 0.0
    %114 = vmatprep.subr.mxu0 0.0
    %115 = vmatpush2.xpose.msra.mxu0 0.0
    %116 = vmatprep.subr.mxu0 0.0
    %117 = vmatpush2.xpose.msra.mxu0 0.0
    %118 = vmatprep.subr.mxu0 0.0
    %119 = vmatpush2.xpose.msra.mxu0 0.0
    %120 = vmatprep.subr.mxu0 0.0
    %121 = vmatpush2.xpose.msra.mxu0 0.0
    %122 = vmatprep.mubr.f32.mxu0 0.0
    %123 = vmatmul.mubr.f32.gmra.mxu0 %v54
    %v124 = vpop.f32.mrf.mxu0
    %v125 = vadd.f32 0.0, %v124
    %v126 = vpop.f32.mrf.mxu0
    %127 = vmatprep.mubr.f32.mxu0 0.0
    %128 = vmatmul.mubr.f32.gmra.mxu0 %v55
    %v129 = vpop.f32.mrf.mxu0
    %v130 = vadd.f32 0.0, %v129
    %v131 = vpop.f32.mrf.mxu0
    %132 = vdwg.mxu0
    %v133 = vld [vmem:[%s1] sm:$0xff]
    %v134 = vld [vmem:[%s1 + $0x8] sm:$0xff]
    %v135 = vld [vmem:[%s2] sm:$0x1]
    %137 = vset.pattern.permute.xlu0 0
    %138 = vperm.xlu0 %137, %v133
    %v139 = vpop.permute.xlu0 %138
    %142 = vset.pattern.permute.xlu0 0
    %143 = vperm.xlu0 %142, %v134
    %v144 = vpop.permute.xlu0 %143
    %v147 = vlaneseq
    %v148 = vshrl.u32 %v147, 7
    %v149 = vsub.s32 0, %v148
    %v150 = vrot.slane %v135, %v149
    %v152 = vadd.f32 %v139, %v150
    %v153 = vadd.f32 %v144, %v150
    %v154 = vmul.f32 %v125, 2.0
    %v155 = vmul.f32 %v130, 2.0
    %v156 = vsub.f32 %v152, %v154
    %v157 = vsub.f32 %v153, %v155
    %v158 = vmax.f32 %v156, 0.0
    %v159 = vmax.f32 %v157, 0.0
    %s160 = sld [smem:[#allocation2 + $0x4]]
    %v161 = vstv %s160
    %v162 = vmul.f32 %v158, %v161
    %v163 = vmul.f32 %v159, %v161
    %v164 = vmul.f32 %v162, 1.442695
    %v165 = vpow.pop %v164
    %v166 = vmul.f32 %v163, 1.442695
    %v167 = vpow.pop %v166
    %v168 = vmul.f32 %v165, %v165
    %v169 = vmul.f32 %v167, %v167
    %v170 = vadd.f32 %v165, %v168
    %v171 = vadd.f32 %v167, %v169
    %v172 = vmul.f32 %v168, %v168
    %v173 = vmul.f32 %v169, %v169
    %v174 = vadd.f32 %v170, %v172
    %v175 = vadd.f32 %v171, %v173
    %v176 = vmul.f32 %v172, %v172
    %v177 = vmul.f32 %v173, %v173
    %v178 = vadd.f32 %v174, %v176
    %v179 = vadd.f32 %v175, %v177
    %v180 = vmul.f32 %v176, %v176
    %v181 = vmul.f32 %v177, %v177
    %v182 = vadd.f32 %v178, %v180
    %v183 = vadd.f32 %v179, %v181
    %s184 = smul.u32 0, 16
    %v185 = vlaneseq
    %v186 = vshrl.u32 %v185, 7
    %v187 = vadd.s32 %v186, 8
    %v188 = vstv %s184
    %v189 = vadd.s32 %v188, %v186
    %v190 = vadd.s32 %v188, %v187
    %s191 = smul.u32 0, 16
    %v192 = vlaneseq
    %v193 = vand.u32 %v192, 127
    %v194 = vstv %s191
    %v195 = vadd.s32 %v194, %v193
    %vm196 = vcmp.lt.s32.totalorder %v189, 8
    %vm197 = vcmp.lt.s32.totalorder %v190, 8
    %vm198 = vcmp.lt.s32.totalorder %v189, 16
    %vm199 = vcmp.lt.s32.totalorder %v190, 16
    %v200 = vsel %vm198, -1.0, 0.0
    %v201 = vsel %vm199, -1.0, 0.0
    %v202 = vsel %vm196, 1.0, %v200
    %v203 = vsel %vm197, 1.0, %v201
    %vm204 = vcmp.lt.s32.totalorder %v195, 8
    %vm205 = vcmp.lt.s32.totalorder %v195, 16
    %v206 = vsel %vm205, -1.0, 0.0
    %v207 = vsel %vm204, 1.0, %v206
    %v208 = vmul.f32 %v182, %v207
    %v209 = vmul.f32 %v183, %v207
    %vm210 = vcmask 130048
    %v211 = vsel %vm210, %v208, 0.0
    %212 = vadd.xlane.f32.xlu0 %v211
    %v213 = vpop.xlane.xlu0 %212
    %v214 = vsel %vm210, %v209, 0.0
    %215 = vadd.xlane.f32.xlu0 %v214
    %v216 = vpop.xlane.xlu0 %215
    %v217 = vld [vmem:[%s5] sm:$0xff]
    %v218 = vld [vmem:[%s5 + $0x8] sm:$0xff]
    %v219 = vmul.f32 %v202, %v213
    %v220 = vmul.f32 %v203, %v216
    %v221 = vadd.f32 %v217, %v219
    %v222 = vadd.f32 %v218, %v220
    %vm223 = vcmask 7168
    %224 = vst.msk [vmem:[%s5] sm:$0xff] %vm223, %v221
    %225 = vst.msk [vmem:[%s5 + $0x8] sm:$0xff] %vm223, %v222
    // Predicated region
    $region34: #{tpu_custom_call.1} parent=1 // pred_check
      _
    $region35: #{tpu_custom_call.1} parent=1 // pred_check_branch
      %227 = sbr.rel (0) target = $region37
    $region36: #{tpu_custom_call.1} parent=1 // pred_region
      _
    $region37: #{tpu_custom_call.1} parent=1 // pred_fallthru
      _
    // Predicated region
    $region38: #{tpu_custom_call.1} parent=1 // pred_check
      _
    $region39: #{tpu_custom_call.1} parent=1 // pred_check_branch
      %229 = sbr.rel (0) target = $region41
    $region40: #{tpu_custom_call.1} parent=1 // pred_region
      _
    $region41: #{tpu_custom_call.1} parent=1 // pred_fallthru
      _
    %230 = vsyncpa [#allocation3], 1
    %231 = vsyncpa [#allocation4], 1

</llo_original>
